<compile_context>
chip_gen: v7x
topology: tpu7x:2x2x1
jax: 0.10.0
libtpu: 0.0.40
codegen_flags: <defaults>
</compile_context>

<pallas_src>
import math

import numpy as np
import jax
import jax.numpy as jnp
from jax import lax
from jax.experimental import pallas as pl
from jax.experimental.pallas import tpu as pltpu


def _pair(v):
    if isinstance(v, (tuple, list)):
        return tuple(v)
    return (v, v)


def _generate_hold_kernel_2d(zoh_kernel_size, order):
    """NumPy replica of torch _generate_hold_kernel (single 2-D plane)."""
    kh, kw = _pair(zoh_kernel_size)
    zoh = np.ones((kh, kw), np.float64)
    tmp = zoh.copy()
    pad_h = (kw + 1) // 2   # (sic) the torch code swaps the kernel-size indices
    pad_w = (kh + 1) // 2
    for _ in range(order):
        th, tw = tmp.shape
        tp = np.pad(tmp, ((pad_h, pad_h), (pad_w, pad_w)))
        oh = th + 2 * pad_h - kh + 1
        ow = tw + 2 * pad_w - kw + 1
        out = np.zeros((oh, ow), np.float64)
        for i in range(kh):          # cross-correlation, like F.conv2d
            for j in range(kw):
                out += zoh[i, j] * tp[i:i + oh, j:j + ow]
        tmp = out
    return tmp


def _generate_hold_vectors(zoh_kernel_size, order):
    """Rank-1 factors (col, row) such that kernel2d == outer(col, row)."""
    kh, kw = _pair(zoh_kernel_size)
    pad_h = (kw + 1) // 2
    pad_w = (kh + 1) // 2
    col = np.ones(kh, np.float64)
    row = np.ones(kw, np.float64)
    ones_h = np.ones(kh, np.float64)
    ones_w = np.ones(kw, np.float64)
    for _ in range(order):
        # all-ones filters are symmetric, so convolve == cross-correlate
        col = np.convolve(np.pad(col, pad_h), ones_h, mode='valid')
        row = np.convolve(np.pad(row, pad_w), ones_w, mode='valid')
    return col, row


def _make_hold_conv_kernel(col_taps, row_taps, h, w, pads):
    """Kernel body: in-kernel zero padding + separable two-pass filtering."""
    pad_top, pad_bot, pad_left, pad_right = pads
    kh, kw = len(col_taps), len(row_taps)

    def kernel(x_ref, b_ref, o_ref, xpad_ref, hbuf_ref):
        # x_ref: (TN,1,H,W)  b_ref: (C,) in SMEM  o_ref: (TN,1,H_out,W_out)
        # xpad_ref: (TN,Hp,Wp) f32     hbuf_ref: (TN,Hp,W_out) f32
        tn, hp, wp = xpad_ref.shape
        w_out = wp - kw + 1
        h_out = hp - kh + 1
        cc = pl.program_id(1)
        f32 = jnp.float32

        # In-kernel zero padding: zero only the thin halo bands (done every
        # step so a megacore split — separate per-core scratch — stays safe),
        # then write the interior once (single, hoisted dtype cast).
        if pad_left:
            xpad_ref[:, :, :pad_left] = jnp.zeros((tn, hp, pad_left), f32)
        if pad_right:
            xpad_ref[:, :, wp - pad_right:] = jnp.zeros((tn, hp, pad_right), f32)
        if pad_top:
            xpad_ref[:, :pad_top, :] = jnp.zeros((tn, pad_top, wp), f32)
        if pad_bot:
            xpad_ref[:, hp - pad_bot:, :] = jnp.zeros((tn, pad_bot, wp), f32)
        xpad_ref[:, pad_top:pad_top + h, pad_left:pad_left + w] = (
            x_ref[:, 0, :, :].astype(f32))

        # Pass 1: horizontal (W) taps over all Hp rows; the zero halo rows
        # stay zero, so hbuf needs no separate halo zeroing.
        acc = None
        for j, wj in enumerate(row_taps):
            sl = xpad_ref[:, :, j:j + w_out]
            term = sl if wj == 1.0 else wj * sl
            acc = term if acc is None else acc + term
        hbuf_ref[...] = acc

        # Pass 2: vertical (H) taps + per-channel bias scalar, single store.
        out = None
        for i, wi in enumerate(col_taps):
            sl = hbuf_ref[:, i:i + h_out, :]
            term = sl if wi == 1.0 else wi * sl
            out = term if out is None else out + term
        out = out + b_ref[cc]                       # scalar from SMEM
        o_ref[:, 0, :, :] = out.astype(o_ref.dtype)

    return kernel


def _padded_block_bytes(rows, d1, d2, itemsize):
    """Approx VMEM footprint of a (rows, d1, d2) block after (sublane,lane) tiling."""
    sublane = {4: 8, 2: 16, 1: 32}.get(itemsize, 8)
    return rows * (-(-d1 // sublane) * sublane) * (-(-d2 // 128) * 128) * itemsize


def hold_conv2d(x, col_taps, row_taps, bias=None, *, stride=1, padding=0,
                dilation=1, padding_mode='zeros'):
    """Pallas forward pass of HoldConv2d (separable depthwise hold filter + bias)."""
    assert x.ndim == 4, "expected NCHW input"
    sh, sw = _pair(stride)
    dh, dw = _pair(dilation)
    ph, pw = _pair(padding)
    assert (sh, sw) == (1, 1) and (dh, dw) == (1, 1) and padding_mode == 'zeros', (
        "TODO(synk): only the default stride=1 / dilation=1 / 'zeros' path")

    n, c, h, w = x.shape
    col_taps = [float(v) for v in np.asarray(col_taps).reshape(-1)]
    row_taps = [float(v) for v in np.asarray(row_taps).reshape(-1)]
    kh, kw = len(col_taps), len(row_taps)

    # Module's "same" padding folded with the conv2d padding parameter.
    pad_top, pad_bot = kh // 2 + ph, (kh - 1) // 2 + ph
    pad_left, pad_right = kw // 2 + pw, (kw - 1) // 2 + pw
    hp = h + pad_top + pad_bot
    wp = w + pad_left + pad_right
    h_out = hp - kh + 1
    w_out = wp - kw + 1

    if bias is None:
        bias_f32 = jnp.zeros((c,), jnp.float32)
    else:
        bias_f32 = jnp.asarray(bias, jnp.float32)

    # Generation-aware block sizing: v5e/v6e have 128 MiB VMEM per core,
    # v7x has 64 MiB — derive the budget instead of hard-coding one.
    try:
        vmem_cap = int(pltpu.get_tpu_info().vmem_capacity_bytes)
    except Exception:
        vmem_cap = 64 << 20
    vmem_limit = min(int(vmem_cap * 3 // 4), 96 << 20)
    block_budget = int(vmem_limit * 0.85)

    isz = x.dtype.itemsize
    per_tn = (2 * _padded_block_bytes(1, h, w, isz)             # input (dbl buf)
              + 2 * _padded_block_bytes(1, h_out, w_out, isz)   # output (dbl buf)
              + _padded_block_bytes(1, hp, wp, 4)               # padded f32 scratch
              + _padded_block_bytes(1, hp, w_out, 4))           # horizontal-pass scratch
    tn = max(1, min(n, block_budget // max(per_tn, 1)))
    # Keep >= ~4 grid steps so double-buffering has work to overlap and a
    # v7x megacore split gets >= 2 steps per TensorCore.
    while tn > 1 and pl.cdiv(n, tn) * c < 4:
        tn = max(1, tn // 2)

    kernel_fn = _make_hold_conv_kernel(
        col_taps, row_taps, h, w, (pad_top, pad_bot, pad_left, pad_right))

    out = pl.pallas_call(
        kernel_fn,
        out_shape=jax.ShapeDtypeStruct((n, c, h_out, w_out), x.dtype),
        grid=(pl.cdiv(n, tn), c),
        in_specs=[
            pl.BlockSpec((tn, 1, h, w), lambda nb, cc: (nb, cc, 0, 0)),
            pl.BlockSpec(memory_space=pltpu.MemorySpace.SMEM),   # per-channel bias
        ],
        out_specs=pl.BlockSpec((tn, 1, h_out, w_out), lambda nb, cc: (nb, cc, 0, 0)),
        scratch_shapes=[
            pltpu.VMEM((tn, hp, wp), jnp.float32),      # zero-padded input block
            pltpu.VMEM((tn, hp, w_out), jnp.float32),   # horizontal-pass result
        ],
        compiler_params=pltpu.CompilerParams(
            dimension_semantics=("parallel", "parallel"),
            vmem_limit_bytes=vmem_limit),
    )(x, bias_f32)

    return out


class HoldConv2d:
    """JAX/Pallas port of deepy.nn.layer.HoldConv2d (forward only)."""

    def __init__(self, in_channels, zoh_kernel_size, order=0, stride=1,
                 padding=0, dilation=1, bias=True, padding_mode='zeros',
                 *, key=None, dtype=jnp.float32):
        self.in_channels = in_channels
        self.out_channels = in_channels
        self.order = order
        self.stride = _pair(stride)
        self.padding = _pair(padding)
        self.dilation = _pair(dilation)
        self.groups = in_channels
        self.padding_mode = padding_mode

        col, row = _generate_hold_vectors(zoh_kernel_size, order)
        kernel2d = np.outer(col, row)
        # The rank-1 factorization must reproduce the torch generator exactly
        # (holds for rectangular / cropped kernels too).
        assert np.allclose(kernel2d,
                           _generate_hold_kernel_2d(zoh_kernel_size, order))
        self.col = col.astype(np.float32)
        self.row = row.astype(np.float32)
        self.kernel2d = kernel2d.astype(np.float32)
        self.kernel_size = self.kernel2d.shape
        # Parity with the torch module's (C, 1, KH, KW) non-trainable buffer.
        self.kernel = jnp.asarray(
            np.repeat(self.kernel2d[None, None], in_channels, axis=0), dtype)

        if bias:
            fan_in = self.kernel_size[0] * self.kernel_size[1]   # 1 * KH * KW
            bound = 1.0 / math.sqrt(fan_in)
            if key is None:
                key = jax.random.PRNGKey(0)
            self.bias = jax.random.uniform(
                key, (self.out_channels,), dtype, minval=-bound, maxval=bound)
        else:
            self.bias = None

    def __call__(self, x):
        return hold_conv2d(x, self.col, self.row, self.bias,
                           stride=self.stride, padding=self.padding,
                           dilation=self.dilation,
                           padding_mode=self.padding_mode)


def _reference(x, layer):
    """Depthwise cross-correlation reference via lax.conv (same padding rule)."""
    kh, kw = layer.kernel_size
    pad_t, pad_b = kh // 2, (kh - 1) // 2
    pad_l, pad_r = kw // 2, (kw - 1) // 2
    xp = jnp.pad(x, ((0, 0), (0, 0), (pad_t, pad_b), (pad_l, pad_r)))
    ref = lax.conv_general_dilated(
        xp.astype(jnp.float32), layer.kernel.astype(jnp.float32),
        window_strides=(1, 1), padding='VALID',
        dimension_numbers=('NCHW', 'OIHW', 'NCHW'),
        feature_group_count=x.shape[1])
    if layer.bias is not None:
        ref = ref + layer.bias.astype(jnp.float32)[None, :, None, None]
    return ref.astype(x.dtype)


if __name__ == "__main__":
    key = jax.random.PRNGKey(0)
    k_x, k_b = jax.random.split(key)

    N, C, H, W = 2, 4, 16, 16
    x = jax.random.normal(k_x, (N, C, H, W), dtype=jnp.float32)

    # order=1, zoh_kernel_size=2 -> separable 3x3 kernel [1,2,1] (x) [1,2,1].
    layer = HoldConv2d(in_channels=C, zoh_kernel_size=2, order=1, key=k_b)
    y = jax.block_until_ready(layer(x))
    assert y.shape == (N, C, H, W), y.shape
    assert y.dtype == x.dtype
    np.testing.assert_allclose(np.asarray(y), np.asarray(_reference(x, layer)),
                               rtol=1e-5, atol=1e-4)

    # order=0, zoh_kernel_size=2 -> even 2x2 kernel with asymmetric padding,
    # no bias: exercises the pad_top != pad_bot / pad_left != pad_right path.
    layer0 = HoldConv2d(in_channels=C, zoh_kernel_size=2, order=0, bias=False)
    y0 = jax.block_until_ready(layer0(x))
    assert y0.shape == (N, C, H, W), y0.shape
    np.testing.assert_allclose(np.asarray(y0), np.asarray(_reference(x, layer0)),
                               rtol=1e-5, atol=1e-4)

    print("KERNEL_OK")
</pallas_src>

<mosaic_0001>
module attributes {stable_mosaic.version = 11 : i64} {
  func.func @kernel(%arg0: i32, %arg1: i32, %arg2: memref<2x1x16x16xf32, #tpu.memory_space<vmem>>, %arg3: memref<4xf32, #tpu.memory_space<smem>>, %arg4: memref<2x1x16x16xf32, #tpu.memory_space<vmem>>, %arg5: memref<2x18x18xf32, #tpu.memory_space<vmem>>, %arg6: memref<2x18x16xf32, #tpu.memory_space<vmem>>) attributes {dimension_semantics = [#tpu.dimension_semantics<parallel>, #tpu.dimension_semantics<parallel>], iteration_bounds = array<i64: 1, 4>, scalar_prefetch = 0 : i64, scratch_operands = 2 : i64, tpu.core_type = #tpu.core_type<tc>, window_params = [{transform_indices = @transform_0, window_bounds = array<i64: 2, 1, 16, 16>}, {transform_indices = @transform_1, window_bounds = array<i64: 4>}, {transform_indices = @transform_2, window_bounds = array<i64: 2, 1, 16, 16>}]} {
    %cst = arith.constant 0.000000e+00 : f32
    %0 = vector.broadcast %cst : f32 to vector<2x18x1xf32>
    %c0 = arith.constant 0 : index
    %c0_0 = arith.constant 0 : index
    %c0_1 = arith.constant 0 : index
    %1 = vector.load %arg5[%c0, %c0_0, %c0_1] : memref<2x18x18xf32, #tpu.memory_space<vmem>>, vector<2x18x1xf32>
    tpu.vector_store %arg5[%c0, %c0_0, %c0_1], %0 {strides = array<i32>} : memref<2x18x18xf32, #tpu.memory_space<vmem>>, vector<2x18x1xf32>,
    %cst_2 = arith.constant 0.000000e+00 : f32
    %2 = vector.broadcast %cst_2 : f32 to vector<2x18x1xf32>
    %c0_3 = arith.constant 0 : index
    %c0_4 = arith.constant 0 : index
    %c17 = arith.constant 17 : index
    %3 = vector.load %arg5[%c0_3, %c0_4, %c17] : memref<2x18x18xf32, #tpu.memory_space<vmem>>, vector<2x18x1xf32>
    tpu.vector_store %arg5[%c0_3, %c0_4, %c17], %2 {strides = array<i32>} : memref<2x18x18xf32, #tpu.memory_space<vmem>>, vector<2x18x1xf32>,
    %cst_5 = arith.constant 0.000000e+00 : f32
    %4 = vector.broadcast %cst_5 : f32 to vector<2x1x18xf32>
    %c0_6 = arith.constant 0 : index
    %c0_7 = arith.constant 0 : index
    %c0_8 = arith.constant 0 : index
    %5 = vector.load %arg5[%c0_6, %c0_7, %c0_8] : memref<2x18x18xf32, #tpu.memory_space<vmem>>, vector<2x1x18xf32>
    tpu.vector_store %arg5[%c0_6, %c0_7, %c0_8], %4 {strides = array<i32>} : memref<2x18x18xf32, #tpu.memory_space<vmem>>, vector<2x1x18xf32>,
    %cst_9 = arith.constant 0.000000e+00 : f32
    %6 = vector.broadcast %cst_9 : f32 to vector<2x1x18xf32>
    %c0_10 = arith.constant 0 : index
    %c17_11 = arith.constant 17 : index
    %c0_12 = arith.constant 0 : index
    %7 = vector.load %arg5[%c0_10, %c17_11, %c0_12] : memref<2x18x18xf32, #tpu.memory_space<vmem>>, vector<2x1x18xf32>
    tpu.vector_store %arg5[%c0_10, %c17_11, %c0_12], %6 {strides = array<i32>} : memref<2x18x18xf32, #tpu.memory_space<vmem>>, vector<2x1x18xf32>,
    %c0_13 = arith.constant 0 : index
    %c0_14 = arith.constant 0 : index
    %c0_15 = arith.constant 0 : index
    %c0_16 = arith.constant 0 : index
    %8 = vector.load %arg2[%c0_13, %c0_14, %c0_15, %c0_16] : memref<2x1x16x16xf32, #tpu.memory_space<vmem>>, vector<2x1x16x16xf32>
    %9 = vector.shape_cast %8 : vector<2x1x16x16xf32> to vector<2x16x16xf32>
    %c0_17 = arith.constant 0 : index
    %c1 = arith.constant 1 : index
    %c1_18 = arith.constant 1 : index
    %10 = vector.load %arg5[%c0_17, %c1, %c1_18] : memref<2x18x18xf32, #tpu.memory_space<vmem>>, vector<2x16x16xf32>
    tpu.vector_store %arg5[%c0_17, %c1, %c1_18], %9 {strides = array<i32>} : memref<2x18x18xf32, #tpu.memory_space<vmem>>, vector<2x16x16xf32>,
    %c0_19 = arith.constant 0 : index
    %c0_20 = arith.constant 0 : index
    %c0_21 = arith.constant 0 : index
    %11 = vector.load %arg5[%c0_19, %c0_20, %c0_21] : memref<2x18x18xf32, #tpu.memory_space<vmem>>, vector<2x18x16xf32>
    %c0_22 = arith.constant 0 : index
    %c0_23 = arith.constant 0 : index
    %c1_24 = arith.constant 1 : index
    %12 = vector.load %arg5[%c0_22, %c0_23, %c1_24] : memref<2x18x18xf32, #tpu.memory_space<vmem>>, vector<2x18x16xf32>
    %cst_25 = arith.constant 2.000000e+00 : f32
    %13 = vector.broadcast %cst_25 : f32 to vector<2x18x16xf32>
    %14 = arith.mulf %13, %12 : vector<2x18x16xf32>
    %15 = arith.addf %11, %14 : vector<2x18x16xf32>
    %c0_26 = arith.constant 0 : index
    %c0_27 = arith.constant 0 : index
    %c2 = arith.constant 2 : index
    %16 = vector.load %arg5[%c0_26, %c0_27, %c2] : memref<2x18x18xf32, #tpu.memory_space<vmem>>, vector<2x18x16xf32>
    %17 = arith.addf %15, %16 : vector<2x18x16xf32>
    %c0_28 = arith.constant 0 : index
    %c0_29 = arith.constant 0 : index
    %c0_30 = arith.constant 0 : index
    %18 = vector.load %arg6[%c0_28, %c0_29, %c0_30] : memref<2x18x16xf32, #tpu.memory_space<vmem>>, vector<2x18x16xf32>
    tpu.vector_store %arg6[%c0_28, %c0_29, %c0_30], %17 {strides = array<i32>} : memref<2x18x16xf32, #tpu.memory_space<vmem>>, vector<2x18x16xf32>,
    %c0_31 = arith.constant 0 : index
    %c0_32 = arith.constant 0 : index
    %c0_33 = arith.constant 0 : index
    %19 = vector.load %arg6[%c0_31, %c0_32, %c0_33] : memref<2x18x16xf32, #tpu.memory_space<vmem>>, vector<2x16x16xf32>
    %c0_34 = arith.constant 0 : index
    %c1_35 = arith.constant 1 : index
    %c0_36 = arith.constant 0 : index
    %20 = vector.load %arg6[%c0_34, %c1_35, %c0_36] : memref<2x18x16xf32, #tpu.memory_space<vmem>>, vector<2x16x16xf32>
    %cst_37 = arith.constant 2.000000e+00 : f32
    %21 = vector.broadcast %cst_37 : f32 to vector<2x16x16xf32>
    %22 = arith.mulf %21, %20 : vector<2x16x16xf32>
    %23 = arith.addf %19, %22 : vector<2x16x16xf32>
    %c0_38 = arith.constant 0 : index
    %c2_39 = arith.constant 2 : index
    %c0_40 = arith.constant 0 : index
    %24 = vector.load %arg6[%c0_38, %c2_39, %c0_40] : memref<2x18x16xf32, #tpu.memory_space<vmem>>, vector<2x16x16xf32>
    %25 = arith.addf %23, %24 : vector<2x16x16xf32>
    %26 = arith.index_cast %arg1 : i32 to index
    %27 = memref.load %arg3[%26] : memref<4xf32, #tpu.memory_space<smem>>
    %28 = vector.broadcast %27 : f32 to vector<2x16x16xf32>
    %29 = arith.addf %25, %28 : vector<2x16x16xf32>
    %c0_41 = arith.constant 0 : index
    %c0_42 = arith.constant 0 : index
    %c0_43 = arith.constant 0 : index
    %c0_44 = arith.constant 0 : index
    %30 = vector.load %arg4[%c0_41, %c0_42, %c0_43, %c0_44] : memref<2x1x16x16xf32, #tpu.memory_space<vmem>>, vector<2x1x16x16xf32>
    %31 = vector.shape_cast %30 : vector<2x1x16x16xf32> to vector<2x16x16xf32>
    %32 = vector.shape_cast %29 : vector<2x16x16xf32> to vector<2x1x16x16xf32>
    tpu.vector_store %arg4[%c0_41, %c0_42, %c0_43, %c0_44], %32 {strides = array<i32>} : memref<2x1x16x16xf32, #tpu.memory_space<vmem>>, vector<2x1x16x16xf32>,
    return
  }
  func.func @transform_0(%arg0: i32, %arg1: i32) -> (i32, i32, i32, i32) {
    %c0_i32 = arith.constant 0 : i32
    %c0_i32_0 = arith.constant 0 : i32
    %c0_i32_1 = arith.constant 0 : i32
    return %arg0, %arg1, %c0_i32, %c0_i32_0 : i32, i32, i32, i32
  }
  func.func @transform_1(%arg0: i32, %arg1: i32) -> i32 {
    %c0_i32 = arith.constant 0 : i32
    %c0_i32_0 = arith.constant 0 : i32
    return %c0_i32 : i32
  }
  func.func @transform_2(%arg0: i32, %arg1: i32) -> (i32, i32, i32, i32) {
    %c0_i32 = arith.constant 0 : i32
    %c0_i32_0 = arith.constant 0 : i32
    %c0_i32_1 = arith.constant 0 : i32
    return %arg0, %arg1, %c0_i32, %c0_i32_0 : i32, i32, i32, i32
  }
}

</mosaic_0001>

<llo_original>
// kernel: tpu_custom_call.1
$region0: #{tpu_custom_call.1}
  #allocation0 [shape = 'u32[]', space=smem, size = 0x4, offset = 0x4, fixed_abs, tag = 'smem constant byte address 0x4 - core index']
  #allocation1 [shape = 'u32[144,128]{1,0:T(1,128)}', space=vmem, size = 0x12000, scoped, tag = 'internal scratch']
  #allocation2 [shape = 'f32[2,18,18]{2,1,0:T(8,128)}', space=vmem, size = 0x6000, scoped, tag = 'scratch operand']
  #allocation3 [shape = 'f32[2,18,16]{2,1,0:T(8,128)}', space=vmem, size = 0x6000, scoped, tag = 'scratch operand']
  #allocation10 [shape = 's32[]', space=sflag, size = 0x4, offset = 0, fixed_abs, tag = 'sflag constant byte address 0x0 - dummy sync flag']
  #allocation12 [shape = 's32[]', space=sflag, size = 0x4, offset = 0, fixed_abs, tag = 'sflag constant byte address 0x0 - dummy sync flag']
  %s0 = inlined_call_operand.hbm [shape: f32[2,4,16,16], index: 0, kind: input, shape index: {}]
  %s1 = inlined_call_operand.vmem [shape: f32[4], index: 1, kind: input, shape index: {}]
  %s2 = inlined_call_operand.hbm [shape: f32[2,4,16,16], index: 2, kind: output, shape index: {}]
  %s3 = sld [smem:[#allocation0]]
  $region49: #{tpu_custom_call.1} parent=0
    _
  %s5 = ssub.s32 1, %s3
  %s6 = scalar_select 0, %s5, %s3
  $region1: #{tpu_custom_call.1} parent=0
    #allocation4 [shape = 'u8[32768]{0}', space=vmem, size = 0x8000, scoped, tag = 'input window, operand 0']
    #allocation5 [shape = 's32[2]{0}', space=sflag, size = 0x8, scoped, tag = 'scoped memory for tpu_custom_call.1']
    #allocation6 [shape = 's32[2]{0}', space=sflag, size = 0x8, scoped, tag = 'scoped memory for tpu_custom_call.1']
    #allocation7 [shape = 's32[2]{0}', space=sflag, size = 0x8, scoped, tag = 'scoped memory for tpu_custom_call.1']
    #allocation8 [shape = 'u8[512]{0}', space=smem, size = 0x200, scoped, tag = 'input window, operand 1, single buffered']
    #allocation9 [shape = 'u8[32768]{0}', space=vmem, size = 0x8000, scoped, tag = 'output window, operand 0']
    %7 = vsyncpa [#allocation5], 0
    %s8 = scalar_lea.sflag [#allocation5], 1
    %9 = vsyncpa %s8, 0
    %10 = vsyncpa [#allocation7], 0
    %11 = vsyncpa [#allocation6], 0
    %s12 = scalar_lea.sflag [#allocation6], 1
    %13 = vsyncpa %s12, 0
    loop: start=0, step=1, limit=6
    $region2: #{tpu_custom_call.1} parent=1 // loop_pre_header
      _
    $region3: #{tpu_custom_call.1} parent=1 // loop_header
      %s15 = sphi 0, %s19
      %p16 = scmp.ge.s32.totalorder %s15, 6
      %s22 = sphi 0, %s34
      %s23 = sphi 0, %s30
      %s24 = sphi 0, %s22
      %s25 = sphi 0, %s23
      %s26 = sphi 0, %s24
      %s27 = sphi 0, %s25
      %s39 = sphi 0, %s41
      %s42 = sphi 0, %s39
      %s43 = sphi 0, %s42
      %s59 = sphi 0, %s43
      %s63 = sphi 0, %s63
      %s65 = sphi 0, %s63
      %s66 = sphi 0, %s65
      %s80 = sphi 0, %s66
      %s88 = sphi 0, %s90
      %s91 = sphi 0, %s88
      %s92 = sphi 0, %s91
      %s108 = sphi 0, %s92
    $region4: #{tpu_custom_call.1} parent=1 // loop_header_branch
      %18 = sbr.rel (%p16) target = $region8
    $region5: #{tpu_custom_call.1} parent=1 // loop_body
      %s20 = ssub.s32 %s15, 1
      %s21 = ssub.s32 %s15, 2
      %s28 = sadd.s32 1, %s23
      %p29 = scmp.ge.s32.totalorder %s28, 4
      %s30 = scalar_select %p29, 0, %s28
      %s31 = sadd.s32 1, %s22
      %s32 = scalar_select %p29, %s31, %s22
      %p33 = scmp.ge.s32.totalorder %s32, 1
      %s34 = scalar_select %p33, 0, %s32
      %s35 = ssub.s32 %s22, %s34
      %s36 = ssub.s32 %s23, %s30
      %s37 = sor.u32 %s35, %s36
      %p38 = scmp.eq.s32.totalorder %s37, 0
      %s40 = sadd.s32 %s39, 1
      %s41 = scalar_select %p38, %s39, %s40
      %p44 = pneg %p38
      %p45 = scmp.eq.s32.totalorder %s15, 3
      %p46 = por %p44, %p45
      %p47 = scmp.ne.s32.totalorder %s39, %s42
      %p48 = scmp.eq.s32.totalorder %s15, 0
      %p49 = por %p47, %p48
      %p50 = scmp.ne.s32.totalorder %s39, %s42
      %p51 = scmp.eq.s32.totalorder %s20, 3
      %p52 = por %p50, %p51
      %p53 = scmp.ne.s32.totalorder %s42, %s43
      %p54 = scmp.eq.s32.totalorder %s20, 0
      %p55 = por %p53, %p54
      %p56 = scmp.ne.s32.totalorder %s42, %s43
      %p57 = scmp.eq.s32.totalorder %s21, 3
      %p58 = por %p56, %p57
      %p60 = scmp.ne.s32.totalorder %s43, %s59
      %p61 = scmp.eq.s32.totalorder %s21, 0
      %p62 = por %p60, %p61
      %s64 = sadd.s32 %s63, 1
      %p67 = scmp.eq.s32.totalorder %s15, 3
      %p68 = scmp.ne.s32.totalorder %s63, %s65
      %p69 = scmp.eq.s32.totalorder %s15, 0
      %p70 = por %p68, %p69
      %p71 = scmp.ne.s32.totalorder %s63, %s65
      %p72 = scmp.eq.s32.totalorder %s20, 3
      %p73 = por %p71, %p72
      %p74 = scmp.ne.s32.totalorder %s65, %s66
      %p75 = scmp.eq.s32.totalorder %s20, 0
      %p76 = por %p74, %p75
      %p77 = scmp.ne.s32.totalorder %s65, %s66
      %p78 = scmp.eq.s32.totalorder %s21, 3
      %p79 = por %p77, %p78
      %p81 = scmp.ne.s32.totalorder %s66, %s80
      %p82 = scmp.eq.s32.totalorder %s21, 0
      %p83 = por %p81, %p82
      %s84 = ssub.s32 %s22, %s34
      %s85 = ssub.s32 %s23, %s30
      %s86 = sor.u32 %s84, %s85
      %p87 = scmp.eq.s32.totalorder %s86, 0
      %s89 = sadd.s32 %s88, 1
      %s90 = scalar_select %p87, %s88, %s89
      %p93 = pneg %p87
      %p94 = scmp.eq.s32.totalorder %s15, 3
      %p95 = por %p93, %p94
      %p96 = scmp.ne.s32.totalorder %s88, %s91
      %p97 = scmp.eq.s32.totalorder %s15, 0
      %p98 = por %p96, %p97
      %p99 = scmp.ne.s32.totalorder %s88, %s91
      %p100 = scmp.eq.s32.totalorder %s20, 3
      %p101 = por %p99, %p100
      %p102 = scmp.ne.s32.totalorder %s91, %s92
      %p103 = scmp.eq.s32.totalorder %s20, 0
      %p104 = por %p102, %p103
      %p105 = scmp.ne.s32.totalorder %s91, %s92
      %p106 = scmp.eq.s32.totalorder %s21, 3
      %p107 = por %p105, %p106
      %p109 = scmp.ne.s32.totalorder %s92, %s108
      %p110 = scmp.eq.s32.totalorder %s21, 0
      %p111 = por %p109, %p110
      %p112 = scmp.le.s32.totalorder 1, %s15
      %p113 = scmp.lt.s32.totalorder %s15, 5
      %p114 = pnand %p112, %p113
      %p115 = pneg %p114
      // Predicated region
      $region9: #{tpu_custom_call.1} parent=5 // pred_check
        _
      $region10: #{tpu_custom_call.1} parent=5 // pred_check_branch
        %117 = sbr.rel (%p114) target = $region12
      $region11: #{tpu_custom_call.1} parent=5 // pred_region
        %s118 = ssub.s32 %s15, 1
        // Predicated region
        $region13: #{tpu_custom_call.1} parent=11 // pred_check
          %p119 = pneg %p76
        $region14: #{tpu_custom_call.1} parent=11 // pred_check_branch
          %121 = sbr.rel (%p119) target = $region16
        $region15: #{tpu_custom_call.1} parent=11 // pred_region
          %s123 = ssub.s32 16, 16
          %124 = vsyncadd [#allocation7], %s123
          %s126 = sshll.u32 %s1, 4
          %s127 = int_to_ptr.vmem [resolvable:$true] %s126
          %129 = dma.vmem_to_smem %s127, 16, [#allocation8], [#allocation7]
        $region16: #{tpu_custom_call.1} parent=11 // pred_fallthru
          _
      $region12: #{tpu_custom_call.1} parent=5 // pred_fallthru
        _
      %p130 = scmp.lt.s32.totalorder %s15, 4
      // Predicated region
      $region17: #{tpu_custom_call.1} parent=5 // pred_check
        %p131 = pneg %p130
      $region18: #{tpu_custom_call.1} parent=5 // pred_check_branch
        %133 = sbr.rel (%p131) target = $region20
      $region19: #{tpu_custom_call.1} parent=5 // pred_region
        // Predicated region
        $region21: #{tpu_custom_call.1} parent=19 // pred_check
          %p134 = pneg %p49
        $region22: #{tpu_custom_call.1} parent=19 // pred_check_branch
          %136 = sbr.rel (%p134) target = $region24
        $region23: #{tpu_custom_call.1} parent=19 // pred_region
          #allocation11 [shape = 'u32[6]{0}', space=smem, size = 0x18, scoped, tag = 'DMA stride descriptor']
          %s137 = sand.u32 %s39, 1
          %s138 = scalar_lea.sflag [#allocation5], %s137
          %s139 = sand.u32 %s39, 1
          %s140 = smul.addr %s139, 32
          %s141 = scalar_lea.vmem [#allocation4], %s140
          %s142 = smul.u32 2, %s22
          %s144 = ssub.s32 512, 512
          %145 = vsyncadd %s138, %s144
          %s146 = smul.addr %s23, 2
          %s147 = smul.addr %s142, 8
          %s148 = sadd.s32 %s146, %s147
          %s149 = smul.addr %s148, 128
          %s150 = scalar_lea.hbm %s0, %s149
          %s152 = sshll.u32 1, 14
          %s153 = sxor.u32 4294967295, %s152
          %s155 = sld [smem:[#allocation0]]
          %s156 = sadd.s32 2, %s155
          %s158 = sshll.u32 7, 26
          %s159 = sxor.u32 4294967295, %s158
          %s160 = sand.u32 0, %s159
          %s161 = sshll.u32 %s156, 26
          %s162 = sor.u32 %s160, %s161
          %s163 = sshll.u32 %s141, 4
          %s164 = int_to_ptr.vmem [resolvable:$true] %s163
          %170 = sst [smem:[#allocation11]] 1024
          %s171 = scalar_lea.smem [#allocation11], 1
          %172 = sst [smem:[%s171]] 256
          %s173 = scalar_lea.smem [#allocation11], 2
          %174 = sst [smem:[%s173]] 2
          %s175 = scalar_lea.smem [#allocation11], 3
          %176 = sst [smem:[%s175]] 128
          %s177 = scalar_lea.smem [#allocation11], 4
          %178 = sst [smem:[%s177]] 128
          %s179 = scalar_lea.smem [#allocation11], 5
          %180 = sst [smem:[%s179]] 8
          %182 = dma.general %s150, 512, %s164, %s138, [#allocation10], [#allocation11], %s162, 0
        $region24: #{tpu_custom_call.1} parent=19 // pred_fallthru
          _
      $region20: #{tpu_custom_call.1} parent=5 // pred_fallthru
        _
      %p183 = scmp.le.s32.totalorder 1, %s15
      %p184 = scmp.lt.s32.totalorder %s15, 5
      %p185 = pnand %p183, %p184
      %p186 = pneg %p185
      // Predicated region
      $region25: #{tpu_custom_call.1} parent=5 // pred_check
        _
      $region26: #{tpu_custom_call.1} parent=5 // pred_check_branch
        %188 = sbr.rel (%p185) target = $region28
      $region27: #{tpu_custom_call.1} parent=5 // pred_region
        %s189 = ssub.s32 %s15, 1
        %s190 = sand.u32 %s42, 1
        %s191 = scalar_lea.sflag [#allocation5], %s190
        %s192 = sand.u32 %s42, 1
        %s193 = smul.addr %s192, 32
        %s194 = scalar_lea.vmem [#allocation4], %s193
        // Predicated region
        $region29: #{tpu_custom_call.1} parent=27 // pred_check
          %p195 = pneg %p55
        $region30: #{tpu_custom_call.1} parent=27 // pred_check_branch
          %197 = sbr.rel (%p195) target = $region32
        $region31: #{tpu_custom_call.1} parent=27 // pred_region
          %198 = dma.done %s191, 512
        $region32: #{tpu_custom_call.1} parent=27 // pred_fallthru
          _
        // Predicated region
        $region33: #{tpu_custom_call.1} parent=27 // pred_check
          %p199 = pneg %p76
        $region34: #{tpu_custom_call.1} parent=27 // pred_check_branch
          %201 = sbr.rel (%p199) target = $region36
        $region35: #{tpu_custom_call.1} parent=27 // pred_region
          %202 = dma.done [#allocation7], 16
        $region36: #{tpu_custom_call.1} parent=27 // pred_fallthru
          _
        %203 = sfence
        %s204 = sand.u32 %s42, 1
        %s205 = scalar_lea.sflag [#allocation5], %s204
        %s206 = sand.u32 %s42, 1
        %s207 = smul.addr %s206, 32
        %s208 = scalar_lea.vmem [#allocation4], %s207
        %p209 = pneg %p55
        %p210 = pneg %p52
        %p211 = pneg %p76
        %p212 = pneg %p73
        %p213 = pneg %p104
        %p214 = pneg %p101
        %s215 = sand.u32 %s91, 1
        %s216 = scalar_lea.sflag [#allocation6], %s215
        %s217 = sand.u32 %s91, 1
        %s218 = smul.addr %s217, 32
        %s219 = scalar_lea.vmem [#allocation9], %s218
        %s220 = smul.u32 2, %s24
        %s221 = smul.u32 2, %s24
        %vm222 = vcmask 7168
        %223 = vst.msk [vmem:[#allocation2] sm:$0xff] %vm222, 0.0
        %224 = vst.msk [vmem:[#allocation2 + $0x8] sm:$0xff] %vm222, 0.0
        %vm225 = vcmask 1024
        %226 = vst.msk [vmem:[#allocation2 + $0x10] sm:$0x3] %vm225, 0.0
        %227 = vst.msk [vmem:[#allocation2 + $0x18] sm:$0xff] %vm222, 0.0
        %228 = vst.msk [vmem:[#allocation2 + $0x20] sm:$0xff] %vm222, 0.0
        %229 = vst.msk [vmem:[#allocation2 + $0x28] sm:$0x3] %vm225, 0.0
        %vm230 = vcmask 146568
        %231 = vst.msk [vmem:[#allocation2] sm:$0xff] %vm230, 0.0
        %232 = vst.msk [vmem:[#allocation2 + $0x8] sm:$0xff] %vm230, 0.0
        %vm233 = vcmask 140424
        %234 = vst.msk [vmem:[#allocation2 + $0x10] sm:$0x3] %vm233, 0.0
        %235 = vst.msk [vmem:[#allocation2 + $0x18] sm:$0xff] %vm230, 0.0
        %236 = vst.msk [vmem:[#allocation2 + $0x20] sm:$0xff] %vm230, 0.0
        %237 = vst.msk [vmem:[#allocation2 + $0x28] sm:$0x3] %vm233, 0.0
        %vm238 = vcmask 139264
        %239 = vst.msk [vmem:[#allocation2] sm:$0x1] %vm238, 0.0
        %240 = vst.msk [vmem:[#allocation2 + $0x18] sm:$0x1] %vm238, 0.0
        %241 = vst.msk [vmem:[#allocation2 + $0x11] sm:$0x1] %vm238, 0.0
        %242 = vst.msk [vmem:[#allocation2 + $0x29] sm:$0x1] %vm238, 0.0
        %v243 = vld [vmem:[%s194] sm:$0xff]
        %v244 = vld [vmem:[%s194 + $0x8] sm:$0xff]
        %v245 = vld [vmem:[%s194 + $0x10] sm:$0xff]
        %v246 = vld [vmem:[%s194 + $0x18] sm:$0xff]
        %251 = vrot.lane.b32.xlu0 %v243, 1
        %v252 = vpop.permute.xlu0 %251
        %253 = vrot.lane.b32.xlu0 %v244, 1
        %v254 = vpop.permute.xlu0 %253
        %255 = vrot.lane.b32.xlu0 %v245, 1
        %v256 = vpop.permute.xlu0 %255
        %257 = vrot.lane.b32.xlu0 %v246, 1
        %v258 = vpop.permute.xlu0 %257
        %vm263 = vcmask 138248
        %264 = vst.msk [vmem:[#allocation2 + $0x1] sm:$0xff] %vm263, %v252
        %265 = vst.msk [vmem:[#allocation2 + $0x9] sm:$0xff] %vm263, %v254
        %266 = vst.msk [vmem:[#allocation2 + $0x19] sm:$0xff] %vm263, %v256
        %267 = vst.msk [vmem:[#allocation2 + $0x21] sm:$0xff] %vm263, %v258
        %v268 = vld [vmem:[#allocation2] sm:$0xff]
        %v269 = vld [vmem:[#allocation2 + $0x8] sm:$0xff]
        %v270 = vld [vmem:[#allocation2 + $0x10] sm:$0x3]
        %v271 = vld [vmem:[#allocation2 + $0x18] sm:$0xff]
        %v272 = vld [vmem:[#allocation2 + $0x20] sm:$0xff]
        %v273 = vld [vmem:[#allocation2 + $0x28] sm:$0x3]
        %v274 = vmul.f32 %v268, 2.0
        %v275 = vmul.f32 %v269, 2.0
        %v276 = vmul.f32 %v270, 2.0
        %v277 = vmul.f32 %v271, 2.0
        %v278 = vmul.f32 %v272, 2.0
        %v279 = vmul.f32 %v273, 2.0
        %286 = vrot.lane.b32.xlu0 %v274, 127
        %v287 = vpop.permute.xlu0 %286
        %288 = vrot.lane.b32.xlu0 %v275, 127
        %v289 = vpop.permute.xlu0 %288
        %290 = vrot.lane.b32.xlu0 %v276, 127
        %v291 = vpop.permute.xlu0 %290
        %292 = vrot.lane.b32.xlu0 %v277, 127
        %v293 = vpop.permute.xlu0 %292
        %294 = vrot.lane.b32.xlu0 %v278, 127
        %v295 = vpop.permute.xlu0 %294
        %296 = vrot.lane.b32.xlu0 %v279, 127
        %v297 = vpop.permute.xlu0 %296
        %v304 = vadd.f32 %v268, %v287
        %v305 = vadd.f32 %v269, %v289
        %v306 = vadd.f32 %v270, %v291
        %v307 = vadd.f32 %v271, %v293
        %v308 = vadd.f32 %v272, %v295
        %v309 = vadd.f32 %v273, %v297
        %316 = vrot.lane.b32.xlu0 %v268, 126
        %v317 = vpop.permute.xlu0 %316
        %318 = vrot.lane.b32.xlu0 %v269, 126
        %v319 = vpop.permute.xlu0 %318
        %320 = vrot.lane.b32.xlu0 %v270, 126
        %v321 = vpop.permute.xlu0 %320
        %322 = vrot.lane.b32.xlu0 %v271, 126
        %v323 = vpop.permute.xlu0 %322
        %324 = vrot.lane.b32.xlu0 %v272, 126
        %v325 = vpop.permute.xlu0 %324
        %326 = vrot.lane.b32.xlu0 %v273, 126
        %v327 = vpop.permute.xlu0 %326
        %v334 = vadd.f32 %v304, %v317
        %v335 = vadd.f32 %v305, %v319
        %v336 = vadd.f32 %v306, %v321
        %v337 = vadd.f32 %v307, %v323
        %v338 = vadd.f32 %v308, %v325
        %v339 = vadd.f32 %v309, %v327
        %vm340 = vcmask 130048
        %341 = vst.msk [vmem:[#allocation3] sm:$0xff] %vm340, %v334
        %342 = vst.msk [vmem:[#allocation3 + $0x8] sm:$0xff] %vm340, %v335
        %vm343 = vcmask 123904
        %344 = vst.msk [vmem:[#allocation3 + $0x10] sm:$0x3] %vm343, %v336
        %345 = vst.msk [vmem:[#allocation3 + $0x18] sm:$0xff] %vm340, %v337
        %346 = vst.msk [vmem:[#allocation3 + $0x20] sm:$0xff] %vm340, %v338
        %347 = vst.msk [vmem:[#allocation3 + $0x28] sm:$0x3] %vm343, %v339
        %v348 = vld [vmem:[#allocation3] sm:$0xff]
        %v349 = vld [vmem:[#allocation3 + $0x8] sm:$0xff]
        %v350 = vld [vmem:[#allocation3 + $0x18] sm:$0xff]
        %v351 = vld [vmem:[#allocation3 + $0x20] sm:$0xff]
        %v352 = vld [vmem:[#allocation3 + $0x1] sm:$0xff]
        %v353 = vld [vmem:[#allocation3 + $0x9] sm:$0xff]
        %v354 = vld [vmem:[#allocation3 + $0x19] sm:$0xff]
        %v355 = vld [vmem:[#allocation3 + $0x21] sm:$0xff]
        %v356 = vmul.f32 %v352, 2.0
        %v357 = vmul.f32 %v353, 2.0
        %v358 = vmul.f32 %v354, 2.0
        %v359 = vmul.f32 %v355, 2.0
        %v360 = vadd.f32 %v348, %v356
        %v361 = vadd.f32 %v349, %v357
        %v362 = vadd.f32 %v350, %v358
        %v363 = vadd.f32 %v351, %v359
        %v364 = vld [vmem:[#allocation3 + $0x2] sm:$0xff]
        %v365 = vld [vmem:[#allocation3 + $0xa] sm:$0xff]
        %v366 = vld [vmem:[#allocation3 + $0x1a] sm:$0xff]
        %v367 = vld [vmem:[#allocation3 + $0x22] sm:$0xff]
        %v368 = vadd.f32 %v360, %v364
        %v369 = vadd.f32 %v361, %v365
        %v370 = vadd.f32 %v362, %v366
        %v371 = vadd.f32 %v363, %v367
        %s372 = sld [smem:[#allocation8 + %s25]]
        %v373 = vstv %s372
        %v374 = vadd.f32 %v368, %v373
        %v375 = vadd.f32 %v369, %v373
        %v376 = vadd.f32 %v370, %v373
        %v377 = vadd.f32 %v371, %v373
        %378 = vst.msk [vmem:[%s219] sm:$0xff] %vm340, %v374
        %379 = vst.msk [vmem:[%s219 + $0x8] sm:$0xff] %vm340, %v375
        %380 = vst.msk [vmem:[%s219 + $0x10] sm:$0xff] %vm340, %v376
        %381 = vst.msk [vmem:[%s219 + $0x18] sm:$0xff] %vm340, %v377
        %s382 = sand.u32 %s91, 1
        %s383 = scalar_lea.sflag [#allocation6], %s382
        %s384 = sand.u32 %s91, 1
        %s385 = smul.addr %s384, 32
        %s386 = scalar_lea.vmem [#allocation9], %s385
        // Predicated region
        $region37: #{tpu_custom_call.1} parent=27 // pred_check
          %p387 = pneg %p101
        $region38: #{tpu_custom_call.1} parent=27 // pred_check_branch
          %389 = sbr.rel (%p387) target = $region40
        $region39: #{tpu_custom_call.1} parent=27 // pred_region
          #allocation13 [shape = 'u32[6]{0}', space=smem, size = 0x18, scoped, tag = 'DMA stride descriptor']
          %s390 = smul.u32 2, %s24
          %s392 = ssub.s32 512, 512
          %393 = vsyncadd %s383, %s392
          %s394 = smul.addr %s25, 2
          %s395 = smul.addr %s390, 8
          %s396 = sadd.s32 %s394, %s395
          %s397 = smul.addr %s396, 128
          %s398 = scalar_lea.hbm %s2, %s397
          %s400 = sshll.u32 1, 14
          %s401 = sxor.u32 4294967295, %s400
          %s404 = sshll.u32 7, 18
          %s405 = sxor.u32 4294967295, %s404
          %s406 = sand.u32 0, %s405
          %s408 = sor.u32 %s406, 0
          %s410 = sshll.u32 3, 24
          %s411 = sxor.u32 4294967295, %s410
          %s412 = sand.u32 %s408, %s411
          %s414 = sor.u32 %s412, 0
          %s415 = sshll.u32 %s386, 4
          %s416 = int_to_ptr.vmem [resolvable:$true] %s415
          %422 = sst [smem:[#allocation13]] 256
          %s423 = scalar_lea.smem [#allocation13], 1
          %424 = sst [smem:[%s423]] 1024
          %s425 = scalar_lea.smem [#allocation13], 2
          %426 = sst [smem:[%s425]] 2
          %s427 = scalar_lea.smem [#allocation13], 3
          %428 = sst [smem:[%s427]] 128
          %s429 = scalar_lea.smem [#allocation13], 4
          %430 = sst [smem:[%s429]] 128
          %s431 = scalar_lea.smem [#allocation13], 5
          %432 = sst [smem:[%s431]] 8
          %434 = dma.general %s416, 512, %s398, %s383, [#allocation12], [#allocation13], %s414, 0
        $region40: #{tpu_custom_call.1} parent=27 // pred_fallthru
          _
      $region28: #{tpu_custom_call.1} parent=5 // pred_fallthru
        _
      %p435 = scmp.le.s32.totalorder 2, %s15
      // Predicated region
      $region41: #{tpu_custom_call.1} parent=5 // pred_check
        %p436 = pneg %p435
      $region42: #{tpu_custom_call.1} parent=5 // pred_check_branch
        %438 = sbr.rel (%p436) target = $region44
      $region43: #{tpu_custom_call.1} parent=5 // pred_region
        %s439 = ssub.s32 %s15, 2
        // Predicated region
        $region45: #{tpu_custom_call.1} parent=43 // pred_check
          %p440 = pneg %p107
        $region46: #{tpu_custom_call.1} parent=43 // pred_check_branch
          %442 = sbr.rel (%p440) target = $region48
        $region47: #{tpu_custom_call.1} parent=43 // pred_region
          %s443 = sand.u32 %s92, 1
          %s444 = scalar_lea.sflag [#allocation6], %s443
          %s445 = sand.u32 %s92, 1
          %s446 = smul.addr %s445, 32
          %s447 = scalar_lea.vmem [#allocation9], %s446
          %448 = dma.done %s444, 512
        $region48: #{tpu_custom_call.1} parent=43 // pred_fallthru
          _
      $region44: #{tpu_custom_call.1} parent=5 // pred_fallthru
        _
    $region6: #{tpu_custom_call.1} parent=1 // loop_footer
      %s19 = sadd.s32 1, %s15
    $region7: #{tpu_custom_call.1} parent=1 // loop_footer_branch
      %14 = sbr.rel target = $region3
    $region8: #{tpu_custom_call.1} parent=1 // loop_exit
      _
    %449 = vsyncpa [#allocation5], 1
    %s450 = scalar_lea.sflag [#allocation5], 1
    %451 = vsyncpa %s450, 1
    %452 = vsyncpa [#allocation6], 1
    %s453 = scalar_lea.sflag [#allocation6], 1
    %454 = vsyncpa %s453, 1
    %455 = vsyncpa [#allocation7], 1
    %s456 = scalar_lea.sflag [#allocation7], 1
    %457 = vsyncpa %s456, 1

</llo_original>
